<compile_context>
chip_gen: v7x
topology: tpu7x:2x2x1
jax: 0.10.0
libtpu: 0.0.40
codegen_flags: <defaults>
</compile_context>

<pallas_src>
import functools

import jax
import jax.numpy as jnp
from jax import lax
from jax.experimental import pallas as pl
from jax.experimental.pallas import tpu as pltpu

_LANES = 128


# ---------------------------------------------------------------------------
# Per-generation configuration (queried once at import time).
# ---------------------------------------------------------------------------
def _device_kind() -> str:
    try:
        return jax.devices()[0].device_kind.lower()
    except Exception:  # pragma: no cover - e.g. no TPU attached at import
        return ""


_KIND = _device_kind()
_IS_V7 = ("v7" in _KIND) or ("tpu7" in _KIND)
_IS_V5E = ("v5e" in _KIND) or ("v5 lite" in _KIND) or ("v5litepod" in _KIND)
# Megacore (2 TensorCores per JAX device): v4, v5p, v7x.
_NUM_TC = 2 if (_IS_V7 or "v4" in _KIND or "v5p" in _KIND) else 1
# (rows, 128) f32 tile sizes: 4096 rows = 2 MiB/tile (v7x), 2048 = 1 MiB (v6e),
# 1024 = 0.5 MiB (v5e). Double-buffered totals stay under every generation's
# default scoped-VMEM limit, so no vmem_limit override is needed.
_MAX_TILE_ROWS = 4096 if _IS_V7 else (1024 if _IS_V5E else 2048)


# ---------------------------------------------------------------------------
# Kernels
# ---------------------------------------------------------------------------
def _lat_loss_mean_kernel(x_ref, t_ref, part_ref, acc_ref, *, rows, tile_rows,
                          inner, first_gated):
    """Per-chunk partial sums of (x-t)^2 into a VMEM vector accumulator.

    Grid is (chunks, inner): chunk axis is 'parallel' (megacore), inner axis is
    the 'arbitrary' reduction axis. The accumulator is full-tile shaped so the
    per-step work on interior blocks is a pure VPU sub/mul/add; the expensive
    iota/compare/select masking only runs for blocks >= `first_gated`
    (the ragged last block and any duplicated index-clamped blocks). The
    cross-sublane reduce happens once per chunk in the epilogue.
    """
    c = pl.program_id(0)
    j = pl.program_id(1)

    @pl.when(j == 0)
    def _():
        acc_ref[...] = jnp.zeros_like(acc_ref)

    # Explicit f32 math (no-op for f32 inputs; keeps bf16 inputs accurate).
    d = x_ref[...].astype(jnp.float32) - t_ref[...].astype(jnp.float32)
    sq = d * d
    block_id = c * inner + j

    if first_gated is None:
        # No ragged tail and no duplicated blocks: fast path everywhere.
        acc_ref[...] += sq
    else:
        @pl.when(block_id < first_gated)
        def _():  # interior blocks: plain accumulate, no mask work
            acc_ref[...] += sq

        @pl.when(block_id >= first_gated)
        def _():  # ragged last block and clamped duplicates: mask stale rows
            row_start = block_id * tile_rows
            row_ids = row_start + lax.broadcasted_iota(
                jnp.int32, (tile_rows, _LANES), 0)
            acc_ref[...] += jnp.where(row_ids < rows, sq, 0.0)

    @pl.when(j == pl.num_programs(1) - 1)
    def _():
        # One cross-sublane (XLU) reduce per chunk; lanes finish outside.
        part_ref[...] = jnp.sum(acc_ref[...], axis=0).reshape(1, 1, _LANES)


def _lat_loss_elem_kernel(scale_ref, x_ref, t_ref, o_ref):
    """Elementwise (x-t)^2 / sigma^2 (the reduction='sum' branch)."""
    d = x_ref[...].astype(jnp.float32) - t_ref[...].astype(jnp.float32)
    o_ref[...] = d * d * scale_ref[0]


# ---------------------------------------------------------------------------
# Wrapper
# ---------------------------------------------------------------------------
def _as_lane_slab(a):
    """Flatten to (rows, 128). Free reshape when numel % 128 == 0; otherwise a
    single small pad of the remainder makes the reshape legal (pad values are
    zero in both x and target, so they contribute 0 to the sum)."""
    flat = a.reshape(-1)
    n = flat.shape[0]
    rem = n % _LANES
    if rem:
        flat = jnp.pad(flat, (0, _LANES - rem))
    return flat.reshape(-1, _LANES), n


@functools.partial(jax.jit, static_argnames=("reduction",))
def lat_loss(x, target, sigma, reduction="mean"):
    if reduction not in ("mean", "sum"):
        raise KeyError(reduction)

    x2d, n = _as_lane_slab(x)
    t2d, _ = _as_lane_slab(target)
    rows = x2d.shape[0]
    sigma = jnp.asarray(sigma, dtype=jnp.float32)

    # Big lane-dense tiles; block == full array when it already fits.
    tile_rows = rows if rows <= _MAX_TILE_ROWS else _MAX_TILE_ROWS
    total_blocks = (rows + tile_rows - 1) // tile_rows
    tile_spec = pl.BlockSpec((tile_rows, _LANES), lambda i: (i, 0))

    if reduction == "mean":
        # One chunk per TensorCore (1 on v5e/v6e, 2 on v4/v5p/v7x megacore).
        num_chunks = _NUM_TC if total_blocks >= _NUM_TC else 1
        inner = (total_blocks + num_chunks - 1) // num_chunks

        has_dup = num_chunks * inner != total_blocks
        if has_dup:
            # Clamp the block index so the DMA never goes out of bounds; the
            # gated row mask zeroes the duplicated block's contribution.
            last_block = total_blocks - 1
            in_map = lambda c, j: (jnp.minimum(c * inner + j, last_block), 0)
        else:
            in_map = lambda c, j: (c * inner + j, 0)
        in_spec = pl.BlockSpec((tile_rows, _LANES), in_map)

        ragged = (rows % tile_rows) != 0
        if ragged:
            first_gated = total_blocks - 1   # ragged last block + duplicates
        elif has_dup:
            first_gated = total_blocks       # only duplicated blocks masked
        else:
            first_gated = None               # pure fast path, no mask emitted

        kernel = functools.partial(
            _lat_loss_mean_kernel, rows=rows, tile_rows=tile_rows,
            inner=inner, first_gated=first_gated)

        partials = pl.pallas_call(
            kernel,
            out_shape=jax.ShapeDtypeStruct((num_chunks, 1, _LANES), jnp.float32),
            grid=(num_chunks, inner),
            in_specs=[in_spec, in_spec],
            out_specs=pl.BlockSpec((1, 1, _LANES), lambda c, j: (c, 0, 0)),
            scratch_shapes=[pltpu.VMEM((tile_rows, _LANES), jnp.float32)],
            compiler_params=pltpu.CompilerParams(
                dimension_semantics=("parallel", "arbitrary")
            ),
            cost_estimate=pl.CostEstimate(
                flops=3 * n, transcendentals=0, bytes_accessed=8 * n
            ),
        )(x2d, t2d)
        # Tiny final lane reduce + scale outside the kernel.
        return jnp.sum(partials) / (jnp.float32(n) * sigma * sigma)
    else:
        # reduction == 'sum': PyTorch module returns the *elementwise* tensor.
        scale = (1.0 / (sigma * sigma)).reshape((1,))
        out2d = pl.pallas_call(
            _lat_loss_elem_kernel,
            out_shape=jax.ShapeDtypeStruct((rows, _LANES), jnp.float32),
            grid=(total_blocks,),
            in_specs=[
                pl.BlockSpec(memory_space=pltpu.SMEM),  # 1/sigma^2 scalar
                tile_spec,
                tile_spec,
            ],
            out_specs=tile_spec,
            compiler_params=pltpu.CompilerParams(
                dimension_semantics=("parallel",)
            ),
            cost_estimate=pl.CostEstimate(
                flops=3 * n, transcendentals=0, bytes_accessed=12 * n
            ),
        )(scale, x2d, t2d)
        if n == rows * _LANES:
            return out2d.reshape(x.shape)  # free reshape, no copy
        # Rare ragged fallback: one slice on the flat view, then a free reshape.
        return lax.slice(out2d.reshape(-1), (0,), (n,)).reshape(x.shape)


# ---------------------------------------------------------------------------
# Main
# ---------------------------------------------------------------------------
if __name__ == "__main__":
    key = jax.random.PRNGKey(0)

    def _check(shape, sigma, tag):
        kx, kt = jax.random.split(jax.random.fold_in(key, hash(tag) % (2**31)))
        x = jax.random.normal(kx, shape, dtype=jnp.float32)
        t = jax.random.normal(kt, shape, dtype=jnp.float32)
        s = jnp.float32(sigma)

        got_mean = lat_loss(x, t, sigma, reduction="mean")
        jax.block_until_ready(got_mean)
        ref_mean = jnp.mean((x - t) ** 2) / (s * s)
        assert jnp.allclose(got_mean, ref_mean, rtol=1e-5, atol=1e-6), (
            tag, got_mean, ref_mean)

        got_elem = lat_loss(x, t, sigma, reduction="sum")
        jax.block_until_ready(got_elem)
        ref_elem = (x - t) ** 2 / (s * s)
        assert got_elem.shape == x.shape
        assert jnp.allclose(got_elem, ref_elem, rtol=1e-5, atol=1e-6), tag

    # Primary small NCHW latent (matches the module's typical usage).
    _check((2, 4, 16, 16), 0.5, "small")
    # Multi-block grid: exercises chunked partial sums + ragged last block gating.
    _check((2, 16, 96, 96), 1.3, "multiblock")
    # Element count not a multiple of 128: exercises the pad/slice fallback path.
    _check((2, 3, 5, 7), 0.7, "ragged")

    print("KERNEL_OK")
</pallas_src>

<mosaic_0001>
module attributes {stable_mosaic.version = 11 : i64} {
  func.func @_lat_loss_mean_kernel(%arg0: i32, %arg1: i32, %arg2: memref<16x128xf32, #tpu.memory_space<vmem>>, %arg3: memref<16x128xf32, #tpu.memory_space<vmem>>, %arg4: memref<1x1x128xf32, #tpu.memory_space<vmem>>, %arg5: memref<16x128xf32, #tpu.memory_space<vmem>>) attributes {dimension_semantics = [#tpu.dimension_semantics<parallel>, #tpu.dimension_semantics<arbitrary>], iteration_bounds = array<i64: 1, 1>, scalar_prefetch = 0 : i64, scratch_operands = 1 : i64, tpu.core_type = #tpu.core_type<tc>, window_params = [{transform_indices = @transform_0, window_bounds = array<i64: 16, 128>}, {transform_indices = @transform_1, window_bounds = array<i64: 16, 128>}, {transform_indices = @transform_2, window_bounds = array<i64: 1, 1, 128>}]} {
    %c0_i32 = arith.constant 0 : i32
    %0 = arith.cmpi eq, %arg1, %c0_i32 : i32
    %1 = arith.extui %0 : i1 to i32
    %c0_i32_0 = arith.constant 0 : i32
    %2 = arith.cmpi ne, %1, %c0_i32_0 : i32
    scf.if %2 {
      %cst = arith.constant 0.000000e+00 : f32
      %13 = vector.broadcast %cst : f32 to vector<16x128xf32>
      %c0_10 = arith.constant 0 : index
      %c0_11 = arith.constant 0 : index
      %14 = vector.load %arg5[%c0_10, %c0_11] : memref<16x128xf32, #tpu.memory_space<vmem>>, vector<16x128xf32>
      tpu.vector_store %arg5[%c0_10, %c0_11], %13 {strides = array<i32>} : memref<16x128xf32, #tpu.memory_space<vmem>>, vector<16x128xf32>,
    } else {
    }
    %c0 = arith.constant 0 : index
    %c0_1 = arith.constant 0 : index
    %3 = vector.load %arg2[%c0, %c0_1] : memref<16x128xf32, #tpu.memory_space<vmem>>, vector<16x128xf32>
    %c0_2 = arith.constant 0 : index
    %c0_3 = arith.constant 0 : index
    %4 = vector.load %arg3[%c0_2, %c0_3] : memref<16x128xf32, #tpu.memory_space<vmem>>, vector<16x128xf32>
    %5 = arith.subf %3, %4 : vector<16x128xf32>
    %6 = arith.mulf %5, %5 : vector<16x128xf32>
    %c0_4 = arith.constant 0 : index
    %c0_5 = arith.constant 0 : index
    %7 = vector.load %arg5[%c0_4, %c0_5] : memref<16x128xf32, #tpu.memory_space<vmem>>, vector<16x128xf32>
    %8 = arith.addf %7, %6 : vector<16x128xf32>
    %c0_6 = arith.constant 0 : index
    %c0_7 = arith.constant 0 : index
    %9 = vector.load %arg5[%c0_6, %c0_7] : memref<16x128xf32, #tpu.memory_space<vmem>>, vector<16x128xf32>
    tpu.vector_store %arg5[%c0_6, %c0_7], %8 {strides = array<i32>} : memref<16x128xf32, #tpu.memory_space<vmem>>, vector<16x128xf32>,
    %c0_i32_8 = arith.constant 0 : i32
    %10 = arith.cmpi eq, %arg1, %c0_i32_8 : i32
    %11 = arith.extui %10 : i1 to i32
    %c0_i32_9 = arith.constant 0 : i32
    %12 = arith.cmpi ne, %11, %c0_i32_9 : i32
    scf.if %12 {
      %c0_10 = arith.constant 0 : index
      %c0_11 = arith.constant 0 : index
      %13 = vector.load %arg5[%c0_10, %c0_11] : memref<16x128xf32, #tpu.memory_space<vmem>>, vector<16x128xf32>
      %cst = arith.constant dense<0.000000e+00> : vector<128xf32>
      %14 = vector.multi_reduction <add>, %13, %cst [0] : vector<16x128xf32> to vector<128xf32>
      %15 = vector.shape_cast %14 : vector<128xf32> to vector<1x1x128xf32>
      %c0_12 = arith.constant 0 : index
      %c0_13 = arith.constant 0 : index
      %c0_14 = arith.constant 0 : index
      %16 = vector.load %arg4[%c0_12, %c0_13, %c0_14] : memref<1x1x128xf32, #tpu.memory_space<vmem>>, vector<1x1x128xf32>
      tpu.vector_store %arg4[%c0_12, %c0_13, %c0_14], %15 {strides = array<i32>} : memref<1x1x128xf32, #tpu.memory_space<vmem>>, vector<1x1x128xf32>,
    } else {
    }
    return
  }
  func.func @transform_0(%arg0: i32, %arg1: i32) -> (i32, i32) {
    %c1_i32 = arith.constant 1 : i32
    %0 = arith.muli %arg0, %c1_i32 : i32
    %1 = arith.addi %0, %arg1 : i32
    %c0_i32 = arith.constant 0 : i32
    %c0_i32_0 = arith.constant 0 : i32
    return %1, %c0_i32 : i32, i32
  }
  func.func @transform_1(%arg0: i32, %arg1: i32) -> (i32, i32) {
    %c1_i32 = arith.constant 1 : i32
    %0 = arith.muli %arg0, %c1_i32 : i32
    %1 = arith.addi %0, %arg1 : i32
    %c0_i32 = arith.constant 0 : i32
    %c0_i32_0 = arith.constant 0 : i32
    return %1, %c0_i32 : i32, i32
  }
  func.func @transform_2(%arg0: i32, %arg1: i32) -> (i32, i32, i32) {
    %c0_i32 = arith.constant 0 : i32
    %c0_i32_0 = arith.constant 0 : i32
    %c0_i32_1 = arith.constant 0 : i32
    return %arg0, %c0_i32, %c0_i32_0 : i32, i32, i32
  }
}

</mosaic_0001>

<llo_original>
// kernel: lat_loss.1
$region0: #{lat_loss.1}
  #allocation0 [shape = 'u32[]', space=smem, size = 0x4, offset = 0x4, fixed_abs, tag = 'smem constant byte address 0x4 - core index']
  #allocation1 [shape = 'u32[144,128]{1,0:T(1,128)}', space=vmem, size = 0x12000, scoped, tag = 'internal scratch']
  #allocation2 [shape = 'f32[16,128]{1,0:T(8,128)}', space=vmem, size = 0x2000, scoped, tag = 'scratch operand']
  %s0 = inlined_call_operand.vmem [shape: f32[16,128], index: 0, kind: input, shape index: {}]
  %s1 = inlined_call_operand.vmem [shape: f32[16,128], index: 1, kind: input, shape index: {}]
  %s2 = inlined_call_operand.vmem [shape: f32[1,1,128], index: 2, kind: output, shape index: {}]
  %s3 = sld [smem:[#allocation0]]
  $region26: #{lat_loss.1} parent=0
    _
  %s5 = ssub.s32 1, %s3
  %s6 = scalar_select 0, %s5, %s3
  // Predicated region
  $region2: #{lat_loss.1} parent=0 // pred_check
    _
  $region3: #{lat_loss.1} parent=0 // pred_check_branch
    %8 = sbr.rel (0) target = $region5
  $region4: #{lat_loss.1} parent=0 // pred_region
    %s9 = sadd.s32 0, 0
    %s10 = smul.u32 2, %s9
    %p11 = scmp.lt.s32.totalorder %s10, 1
    %s12 = scalar_select %p11, %s10, 1
    %s13 = smul.addr %s12, 8
    %s14 = scalar_lea.vmem %s0, %s13
    %s15 = sadd.s32 0, 0
    %s16 = smul.u32 2, %s15
  $region5: #{lat_loss.1} parent=0 // pred_fallthru
    _
  // Predicated region
  $region6: #{lat_loss.1} parent=0 // pred_check
    _
  $region7: #{lat_loss.1} parent=0 // pred_check_branch
    %18 = sbr.rel (0) target = $region9
  $region8: #{lat_loss.1} parent=0 // pred_region
    %s19 = sadd.s32 0, 0
    %s20 = smul.u32 2, %s19
    %p21 = scmp.lt.s32.totalorder %s20, 1
    %s22 = scalar_select %p21, %s20, 1
    %s23 = smul.addr %s22, 8
    %s24 = scalar_lea.vmem %s1, %s23
    %s25 = sadd.s32 0, 0
    %s26 = smul.u32 2, %s25
  $region9: #{lat_loss.1} parent=0 // pred_fallthru
    _
  %s27 = sadd.s32 0, 0
  %s28 = smul.u32 2, %s27
  %p29 = scmp.lt.s32.totalorder %s28, 1
  %s30 = scalar_select %p29, %s28, 1
  %s31 = smul.addr %s30, 8
  %s32 = scalar_lea.vmem %s0, %s31
  %s33 = sadd.s32 0, 0
  %s34 = smul.u32 2, %s33
  %p35 = scmp.lt.s32.totalorder %s34, 1
  %s36 = scalar_select %p35, %s34, 1
  %s37 = smul.addr %s36, 8
  %s38 = scalar_lea.vmem %s1, %s37
  %s39 = sadd.s32 0, 0
  %s40 = smul.u32 2, %s39
  %p41 = scmp.lt.s32.totalorder %s40, 1
  %s42 = scalar_select %p41, %s40, 1
  %s43 = smul.addr %s42, 8
  %s44 = scalar_lea.vmem %s0, %s43
  %s45 = sadd.s32 0, 0
  %s46 = smul.u32 2, %s45
  %s47 = sadd.s32 0, 0
  %s48 = smul.u32 2, %s47
  %p49 = scmp.lt.s32.totalorder %s48, 1
  %s50 = scalar_select %p49, %s48, 1
  %s51 = smul.addr %s50, 8
  %s52 = scalar_lea.vmem %s1, %s51
  %s53 = sadd.s32 0, 0
  %s54 = smul.u32 2, %s53
  %p55 = scmp.eq.s32.totalorder 0, 0
  // Predicated region
  $region10: #{lat_loss.1} parent=0 // pred_check
    %p56 = pneg %p55
  $region11: #{lat_loss.1} parent=0 // pred_check_branch
    %58 = sbr.rel (%p56) target = $region13
  $region12: #{lat_loss.1} parent=0 // pred_region
    %59 = vst [vmem:[#allocation2] sm:$0xff] 0.0
    %60 = vst [vmem:[#allocation2 + $0x8] sm:$0xff] 0.0
  $region13: #{lat_loss.1} parent=0 // pred_fallthru
    _
  %v61 = vld [vmem:[%s44] sm:$0xff]
  %v62 = vld [vmem:[%s44 + $0x8] sm:$0xff]
  %v63 = vld [vmem:[%s52] sm:$0xff]
  %v64 = vld [vmem:[%s52 + $0x8] sm:$0xff]
  %v65 = vsub.f32 %v61, %v63
  %v66 = vsub.f32 %v62, %v64
  %v67 = vmul.f32 %v65, %v65
  %v68 = vmul.f32 %v66, %v66
  %v69 = vld [vmem:[#allocation2] sm:$0xff]
  %v70 = vld [vmem:[#allocation2 + $0x8] sm:$0xff]
  %v71 = vadd.f32 %v69, %v67
  %v72 = vadd.f32 %v70, %v68
  %73 = vst [vmem:[#allocation2] sm:$0xff] %v71
  %74 = vst [vmem:[#allocation2 + $0x8] sm:$0xff] %v72
  // Predicated region
  $region14: #{lat_loss.1} parent=0 // pred_check
    %p75 = pneg %p55
  $region15: #{lat_loss.1} parent=0 // pred_check_branch
    %77 = sbr.rel (%p75) target = $region17
  $region16: #{lat_loss.1} parent=0 // pred_region
    %v78 = vld [vmem:[#allocation2] sm:$0xff]
    %v79 = vld [vmem:[#allocation2 + $0x8] sm:$0xff]
    %v80 = vadd.f32 %v78, %v79
    %v81 = vrot.slane %v80, 4
    %v82 = vadd.f32 %v80, %v81
    %v83 = vrot.slane %v82, 2
    %v84 = vadd.f32 %v82, %v83
    %v85 = vrot.slane %v84, 1
    %v86 = vadd.f32 %v84, %v85
    %87 = vst [vmem:[%s2] sm:$0x1] %v86
  $region17: #{lat_loss.1} parent=0 // pred_fallthru
    _
  // Predicated region
  $region18: #{lat_loss.1} parent=0 // pred_check
    _
  $region19: #{lat_loss.1} parent=0 // pred_check_branch
    %89 = sbr.rel (0) target = $region21
  $region20: #{lat_loss.1} parent=0 // pred_region
    _
  $region21: #{lat_loss.1} parent=0 // pred_fallthru
    _
  // Predicated region
  $region22: #{lat_loss.1} parent=0 // pred_check
    _
  $region23: #{lat_loss.1} parent=0 // pred_check_branch
    %91 = sbr.rel (0) target = $region25
  $region24: #{lat_loss.1} parent=0 // pred_region
    _
  $region25: #{lat_loss.1} parent=0 // pred_fallthru
    _

</llo_original>
